<compile_context>
chip_gen: v6e
topology: v6e:2x2x1
jax: 0.10.0
libtpu: 0.0.40
codegen_flags: <defaults>
</compile_context>

<pallas_src>
import jax
import jax.numpy as jnp
from jax.experimental import pallas as pl
from jax.experimental.pallas import tpu as pltpu

# ~1 MiB per block buffer. With input + output each double-buffered the
# resident VMEM footprint is ~4 MiB, safe on every TPU generation's default
# scoped-VMEM limit, so no vmem_limit_bytes override is needed.
_BLOCK_BYTES = 1 << 20

# Candidate lane widths (multiples of 128). Capped at 8192 so the per-block
# row budget always allows a legal multiple-of-8 sublane tile.
_LANE_WIDTHS = (8192, 4096, 2048, 1024, 512, 256, 128)


def _copy_kernel(x_ref, o_ref):
    # forward() is identity on the parameter: each grid step copies one
    # lane-dense tile through VMEM (the HBM in/out buffers are aliased).
    o_ref[...] = x_ref[...]


def basis_generator_forward(w):
    """BasisGenerator.forward(): identity on the parameter, via Pallas.

    Args:
      w: jnp.ndarray of shape (K, num_verts * 3).
    Returns:
      jnp.ndarray with the same shape/dtype/values as `w`.
    """
    K, D = w.shape
    total = K * D
    itemsize = jnp.dtype(w.dtype).itemsize

    # Lane-dense view when possible: fold the flat parameter into rows with a
    # wide, 128-multiple lane axis so every store is an unmasked full vreg.
    width = None
    for cand in _LANE_WIDTHS:
        if total % cand == 0:
            width = cand
            break

    if width is not None:
        rows = total // width
        x = w.reshape(rows, width)          # layout plumbing only (row-major)
    else:
        # Odd lane size (num_verts*3*K not a multiple of 128): keep (K, D)
        # with a full-extent last dim (exempt from the (8,128) rule).
        rows, width = K, D
        x = w

    # Row tiling: largest block within the per-buffer byte budget. Full-extent
    # block when it fits in one step; otherwise a multiple-of-8 sublane tile
    # (edge block is masked automatically by Pallas).
    max_rows = max(8, (_BLOCK_BYTES // itemsize) // max(width, 1))
    if rows <= max_rows:
        block_rows = rows
    else:
        block_rows = (max_rows // 8) * 8

    grid = (pl.cdiv(rows, block_rows),)

    out = pl.pallas_call(
        _copy_kernel,
        out_shape=jax.ShapeDtypeStruct((rows, width), x.dtype),
        grid=grid,
        in_specs=[pl.BlockSpec((block_rows, width), lambda i: (i, 0))],
        out_specs=pl.BlockSpec((block_rows, width), lambda i: (i, 0)),
        # Identity forward: alias the input HBM buffer to the output so no
        # second parameter-sized buffer is allocated (free under jit donation;
        # XLA inserts a copy only if the caller still owns the buffer).
        input_output_aliases={0: 0},
        compiler_params=pltpu.CompilerParams(
            # "parallel" lets the grid shard across v7x's 2 TensorCores;
            # no-op (but harmless) on single-TC v5e/v6e.
            dimension_semantics=("parallel",),
        ),
        cost_estimate=pl.CostEstimate(
            flops=0,
            transcendentals=0,
            bytes_accessed=2 * total * itemsize,
        ),
    )(x)

    return out.reshape(K, D)


class BasisGenerator:
    """JAX mirror of the PyTorch BasisGenerator module."""

    def __init__(self, num_verts, K, key):
        # torch.rand(K, num_verts*3) * 0.01  ->  uniform [0, 0.01)
        self.w = (
            jax.random.uniform(key, (K, num_verts * 3), dtype=jnp.float32) * 0.01
        )

    def __call__(self):
        # Note: the mathematically optimal forward is simply `return self.w`
        # (identity). The Pallas path below is kept as the kernelized hot path
        # and is made near-free via input/output buffer aliasing.
        return basis_generator_forward(self.w)


if __name__ == "__main__":
    key = jax.random.PRNGKey(0)
    num_verts = 128   # small shape; D = num_verts*3 = 384, total = 3072 elems
    K = 8

    model = BasisGenerator(num_verts, K, key)
    out = jax.block_until_ready(model())

    # Sanity: forward is identity on the parameter.
    assert out.shape == (K, num_verts * 3)
    assert out.dtype == model.w.dtype
    assert bool(jnp.allclose(out, model.w))

    print("KERNEL_OK")
</pallas_src>

<mosaic_0001>
module attributes {stable_mosaic.version = 11 : i64} {
  func.func @_copy_kernel(%arg0: i32, %arg1: memref<3x1024xf32, #tpu.memory_space<vmem>>, %arg2: memref<3x1024xf32, #tpu.memory_space<vmem>>) attributes {dimension_semantics = [#tpu.dimension_semantics<parallel>], iteration_bounds = array<i64: 1>, scalar_prefetch = 0 : i64, scratch_operands = 0 : i64, tpu.core_type = #tpu.core_type<tc>, window_params = [{transform_indices = @transform_0, window_bounds = array<i64: 3, 1024>}, {transform_indices = @transform_1, window_bounds = array<i64: 3, 1024>}]} {
    %c0 = arith.constant 0 : index
    %c0_0 = arith.constant 0 : index
    %0 = vector.load %arg1[%c0, %c0_0] : memref<3x1024xf32, #tpu.memory_space<vmem>>, vector<3x1024xf32>
    %c0_1 = arith.constant 0 : index
    %c0_2 = arith.constant 0 : index
    %1 = vector.load %arg2[%c0_1, %c0_2] : memref<3x1024xf32, #tpu.memory_space<vmem>>, vector<3x1024xf32>
    tpu.vector_store %arg2[%c0_1, %c0_2], %0 {strides = array<i32>} : memref<3x1024xf32, #tpu.memory_space<vmem>>, vector<3x1024xf32>,
    return
  }
  func.func @transform_0(%arg0: i32) -> (i32, i32) {
    %c0_i32 = arith.constant 0 : i32
    %c0_i32_0 = arith.constant 0 : i32
    return %arg0, %c0_i32 : i32, i32
  }
  func.func @transform_1(%arg0: i32) -> (i32, i32) {
    %c0_i32 = arith.constant 0 : i32
    %c0_i32_0 = arith.constant 0 : i32
    return %arg0, %c0_i32 : i32, i32
  }
}

</mosaic_0001>

<llo_original>
// kernel: tpu_custom_call.1
$region0: #{tpu_custom_call.1}
  #allocation0 [shape = 'u32[]', space=smem, size = 0x4, offset = 0x4, fixed_abs, tag = 'smem constant byte address 0x4 - core index']
  #allocation1 [shape = 'u32[144,128]{1,0:T(1,128)}', space=vmem, size = 0x12000, scoped, tag = 'internal scratch']
  %s0 = inlined_call_operand.hbm [shape: f32[3,1024], index: 0, kind: input, shape index: {}, may-alias: {0,1}]
  %s1 = inlined_call_operand.hbm [shape: f32[3,1024], index: 1, kind: output, shape index: {}, may-alias: {0,1}]
  %s2 = sld [smem:[#allocation0]]
  $region18: #{tpu_custom_call.1} parent=0
    _
  %s4 = ssub.s32 1, %s2
  %s5 = scalar_select 0, %s4, %s2
  $region1: #{tpu_custom_call.1} parent=0
    #allocation2 [shape = 'u8[16384]{0}', space=vmem, size = 0x4000, scoped, tag = 'input window, operand 0, single buffered']
    #allocation3 [shape = 's32[1]{0}', space=sflag, size = 0x4, scoped, tag = 'scoped memory for tpu_custom_call.1']
    #allocation4 [shape = 's32[1]{0}', space=sflag, size = 0x4, scoped, tag = 'scoped memory for tpu_custom_call.1']
    #allocation5 [shape = 'u8[16384]{0}', space=vmem, size = 0x4000, scoped, tag = 'output window, operand 0, single buffered']
    %6 = vsyncpa [#allocation3], 0
    %7 = vsyncpa [#allocation4], 0
    // Predicated region
    $region2: #{tpu_custom_call.1} parent=1 // pred_check
      _
    $region3: #{tpu_custom_call.1} parent=1 // pred_check_branch
      %9 = sbr.rel (0) target = $region5
    $region4: #{tpu_custom_call.1} parent=1 // pred_region
      %s11 = ssub.s32 512, 512
      %12 = vsyncadd [#allocation3], %s11
      %s14 = sshll.u32 [#allocation2], 4
      %s15 = int_to_ptr.vmem [resolvable:$true] %s14
      %17 = dma.hbm_to_vmem [thread:$0]  %s0, 512, %s15, [#allocation3]
    $region5: #{tpu_custom_call.1} parent=1 // pred_fallthru
      _
    // Predicated region
    $region6: #{tpu_custom_call.1} parent=1 // pred_check
      _
    $region7: #{tpu_custom_call.1} parent=1 // pred_check_branch
      %19 = sbr.rel (0) target = $region9
    $region8: #{tpu_custom_call.1} parent=1 // pred_region
      %20 = dma.done [#allocation3], 512
    $region9: #{tpu_custom_call.1} parent=1 // pred_fallthru
      _
    %v21 = vld [vmem:[#allocation2] sm:$0x77]
    %v22 = vld [vmem:[#allocation2 + $0x8] sm:$0x77]
    %v23 = vld [vmem:[#allocation2 + $0x10] sm:$0x77]
    %v24 = vld [vmem:[#allocation2 + $0x18] sm:$0x77]
    %25 = vst [vmem:[#allocation5] sm:$0x77] %v21
    %26 = vst [vmem:[#allocation5 + $0x8] sm:$0x77] %v22
    %27 = vst [vmem:[#allocation5 + $0x10] sm:$0x77] %v23
    %28 = vst [vmem:[#allocation5 + $0x18] sm:$0x77] %v24
    // Predicated region
    $region10: #{tpu_custom_call.1} parent=1 // pred_check
      _
    $region11: #{tpu_custom_call.1} parent=1 // pred_check_branch
      %30 = sbr.rel (0) target = $region13
    $region12: #{tpu_custom_call.1} parent=1 // pred_region
      %s32 = ssub.s32 512, 512
      %33 = vsyncadd [#allocation4], %s32
      %s35 = sshll.u32 [#allocation5], 4
      %s36 = int_to_ptr.vmem [resolvable:$true] %s35
      %38 = dma.vmem_to_hbm [thread:$0]  %s36, 512, %s1, [#allocation4]
    $region13: #{tpu_custom_call.1} parent=1 // pred_fallthru
      _
    // Predicated region
    $region14: #{tpu_custom_call.1} parent=1 // pred_check
      _
    $region15: #{tpu_custom_call.1} parent=1 // pred_check_branch
      %40 = sbr.rel (0) target = $region17
    $region16: #{tpu_custom_call.1} parent=1 // pred_region
      %41 = dma.done [#allocation4], 512
    $region17: #{tpu_custom_call.1} parent=1 // pred_fallthru
      _
    %42 = vsyncpa [#allocation3], 1
    %43 = vsyncpa [#allocation4], 1

</llo_original>
